<compile_context>
chip_gen: v7x
topology: tpu7x:2x2x1
jax: 0.10.0
libtpu: 0.0.40
codegen_flags: <defaults>
</compile_context>

<pallas_src>
import functools

import jax
import jax.numpy as jnp
from jax.experimental import pallas as pl
from jax.experimental.pallas import tpu as pltpu


def _round_up(v: int, m: int) -> int:
    return ((v + m - 1) // m) * m


# ---------------------------------------------------------------------------
# Kernel: whole MLP fused; weights/biases VMEM-resident (constant index_map ->
# DMA'd once, reused by every batch tile); intermediates stay in vregs.
# ---------------------------------------------------------------------------
def _fused_mlp_kernel(x_ref, w_ref, b_ref, o_ref, *, k_dims, n_dims):
    """Refs:
      x_ref : (bt, din)          f32  VMEM (pipelined over the batch grid)
      w_ref : (L, k_max, n_max)  bf16 VMEM (all weights packed, resident)
      b_ref : (L, n_max)         f32  VMEM (all biases packed, resident)
      o_ref : (bt, n_dims[-1])   f32  VMEM
    k_dims[i] / n_dims[i]: static active-K / padded-N extents of layer i.
    """
    n_layers = len(k_dims)
    h = x_ref[...]
    for i in range(n_layers):
        k, n = k_dims[i], n_dims[i]
        w = w_ref[i, :k, :n]                        # static, tile-aligned slice
        y = jnp.dot(h.astype(jnp.bfloat16), w,      # bf16 MXU, f32 accumulate
                    preferred_element_type=jnp.float32)
        y = y + b_ref[i:i + 1, :n]                  # lane-aligned bias row
        if i < n_layers - 1:
            y = jnp.maximum(y, 0.0)                 # ReLU on all but last layer
        h = y
    o_ref[...] = h.astype(o_ref.dtype)


def init_encoder_params(key, input_dim, hidden_dims, context_dim):
    """Deterministic init mimicking nn.Linear default (uniform +/- 1/sqrt(fan_in)).
    Weights stored as (D_in, D_out) — transpose of torch.nn.Linear.weight."""
    dims = [input_dim] + list(hidden_dims) + [context_dim]
    params = []
    for i in range(len(dims) - 1):
        key, wk, bk = jax.random.split(key, 3)
        bound = 1.0 / jnp.sqrt(dims[i])
        w = jax.random.uniform(wk, (dims[i], dims[i + 1]),
                               minval=-bound, maxval=bound, dtype=jnp.float32)
        b = jax.random.uniform(bk, (dims[i + 1],),
                               minval=-bound, maxval=bound, dtype=jnp.float32)
        params.append((w, b))
    return params


def prepare_encoder_params(params):
    """Pad / pack the parameters ONCE (call at init time, cache the result).

    Returns (w_all, b_all, meta):
      w_all : (L, k_max, n_max) bf16 — all weights zero-padded + packed
      b_all : (L, n_max)        f32  — all biases zero-padded + packed
      meta  : static Python ints/tuples describing the layer geometry
    Doing this outside the per-step path makes the pallas_call the only
    device work per forward (no per-call padding copies of the weights).
    """
    n_layers = len(params)
    in_dims = [w.shape[0] for (w, _) in params]
    out_dims = [w.shape[1] for (w, _) in params]
    n_pad = [_round_up(d, 128) for d in out_dims]       # lane-dense N (MXU + unmasked vst)
    # K as seen by the kernel: layer 0 consumes the UNPADDED input features
    # (MXU pads K internally); later layers consume the padded previous activation.
    k_dims = [in_dims[0]] + n_pad[:-1]
    k_max = _round_up(max(k_dims), 16)                  # bf16 sublane multiple
    n_max = max(n_pad)

    w_all = jnp.zeros((n_layers, k_max, n_max), jnp.bfloat16)
    b_all = jnp.zeros((n_layers, n_max), jnp.float32)
    for i, (w, b) in enumerate(params):
        w_all = w_all.at[i, :w.shape[0], :w.shape[1]].set(w.astype(jnp.bfloat16))
        b_all = b_all.at[i, :b.shape[0]].set(b.astype(jnp.float32))

    meta = dict(in_dim=in_dims[0], out_dim=out_dims[-1],
                k_dims=tuple(k_dims), n_dims=tuple(n_pad))
    return w_all, b_all, meta


def encoder_forward(x, w_all, b_all, meta, *, batch_tile: int = 128):
    """Forward pass matching Encoder.forward.
    `w_all, b_all, meta` come from prepare_encoder_params (built once)."""
    B, din = x.shape
    assert din == meta["in_dim"]
    k_dims, n_dims = meta["k_dims"], meta["n_dims"]
    n_last = n_dims[-1]

    # ---- batch tiling: sublane-multiple tile; >=2 tiles when batch allows ----
    sub = 16 if x.dtype == jnp.bfloat16 else 8          # sublane granularity of x/out blocks
    b_min = _round_up(B, sub)
    half = _round_up(-(-b_min // 2), sub)               # aim for >= 2 tiles (v7x: 2 TCs)
    bt = min(_round_up(batch_tile, sub), max(sub, half))
    b_padded = _round_up(b_min, bt)
    x_in = x if b_padded == B else jnp.pad(x, ((0, b_padded - B), (0, 0)))
    grid = (b_padded // bt,)

    # ---- VMEM budget: derive from footprint, clamp against device capacity ----
    resident = w_all.size * w_all.dtype.itemsize + b_all.size * b_all.dtype.itemsize
    streamed = 2 * bt * (din + n_last) * x.dtype.itemsize     # double-buffered x / out tiles
    needed = 2 * resident + streamed + (8 << 20)              # headroom for Mosaic temps
    try:
        vmem_cap = pltpu.get_tpu_info().vmem_capacity_bytes   # 64 MiB v7x, 128 MiB v5e/v6e
    except Exception:
        vmem_cap = 64 << 20                                   # conservative (v7x)
    vmem_limit = int(min(max(needed, 32 << 20), vmem_cap - (8 << 20)))
    # NOTE: if resident weights ever approach the cap (very wide hidden dims on
    # v7x), switch to a K/N-tiled per-layer pipeline / single-buffer the
    # constant blocks instead of keeping all weights fully resident.

    kernel = functools.partial(_fused_mlp_kernel, k_dims=k_dims, n_dims=n_dims)

    out_pad = pl.pallas_call(
        kernel,
        out_shape=jax.ShapeDtypeStruct((b_padded, n_last), jnp.float32),
        grid=grid,
        in_specs=[
            # Batch tile of x; feature dim stays unpadded (== full array dim).
            pl.BlockSpec((bt, din), lambda i: (i, 0)),
            # Packed weights / biases: constant index_map -> DMA'd once and
            # VMEM-resident across all batch tiles (3 input DMAs total).
            pl.BlockSpec(w_all.shape, lambda i: (0, 0, 0)),
            pl.BlockSpec(b_all.shape, lambda i: (0, 0)),
        ],
        out_specs=pl.BlockSpec((bt, n_last), lambda i: (i, 0)),
        compiler_params=pltpu.CompilerParams(
            dimension_semantics=("parallel",),   # batch axis -> both v7x TensorCores
            vmem_limit_bytes=vmem_limit,
        ),
    )(x_in, w_all, b_all)

    return out_pad[:B, :meta["out_dim"]]


if __name__ == "__main__":
    # Encoder(input_dim=32, hidden_dims=[64, 64], context_dim=16), batch=8.
    input_dim, hidden_dims, context_dim = 32, [64, 64], 16
    batch = 8

    key = jax.random.PRNGKey(0)
    key, xk = jax.random.split(key)
    x = jax.random.normal(xk, (batch, input_dim), dtype=jnp.float32)

    params = init_encoder_params(key, input_dim, hidden_dims, context_dim)

    # Pad/pack parameters ONCE; reuse across every forward call.
    w_all, b_all, meta = prepare_encoder_params(params)
    jax.block_until_ready((w_all, b_all))

    fwd = jax.jit(lambda xb: encoder_forward(xb, w_all, b_all, meta))
    out = fwd(x)
    jax.block_until_ready(out)

    # Pure-JAX reference with the same bf16 operand rounding (f32 accumulation),
    # since the kernel feeds the MXU bf16 operands.
    ref = x
    for i, (w, b) in enumerate(params):
        wq = w.astype(jnp.bfloat16).astype(jnp.float32)
        hq = ref.astype(jnp.bfloat16).astype(jnp.float32)
        ref = hq @ wq + b[None, :]
        if i < len(params) - 1:
            ref = jnp.maximum(ref, 0.0)

    assert out.shape == (batch, context_dim)
    assert jnp.allclose(out, ref, atol=1e-2, rtol=1e-2), float(jnp.max(jnp.abs(out - ref)))

    print("KERNEL_OK")
</pallas_src>

<mosaic_0001>
module attributes {stable_mosaic.version = 11 : i64} {
  func.func @_fused_mlp_kernel(%arg0: i32, %arg1: memref<8x32xf32, #tpu.memory_space<vmem>>, %arg2: memref<3x128x128xbf16, #tpu.memory_space<vmem>>, %arg3: memref<3x128xf32, #tpu.memory_space<vmem>>, %arg4: memref<8x128xf32, #tpu.memory_space<vmem>>) attributes {dimension_semantics = [#tpu.dimension_semantics<parallel>], iteration_bounds = array<i64: 1>, scalar_prefetch = 0 : i64, scratch_operands = 0 : i64, tpu.core_type = #tpu.core_type<tc>, window_params = [{transform_indices = @transform_0, window_bounds = array<i64: 8, 32>}, {pipeline_mode = #tpu.pipeline_mode<synchronous>, transform_indices = @transform_1, window_bounds = array<i64: 3, 128, 128>}, {pipeline_mode = #tpu.pipeline_mode<synchronous>, transform_indices = @transform_2, window_bounds = array<i64: 3, 128>}, {transform_indices = @transform_3, window_bounds = array<i64: 8, 128>}]} {
    %c0 = arith.constant 0 : index
    %c0_0 = arith.constant 0 : index
    %0 = vector.load %arg1[%c0, %c0_0] : memref<8x32xf32, #tpu.memory_space<vmem>>, vector<8x32xf32>
    %c0_1 = arith.constant 0 : index
    %c0_2 = arith.constant 0 : index
    %c0_3 = arith.constant 0 : index
    %1 = vector.load %arg2[%c0_1, %c0_2, %c0_3] : memref<3x128x128xbf16, #tpu.memory_space<vmem>>, vector<1x32x128xbf16>
    %2 = vector.shape_cast %1 : vector<1x32x128xbf16> to vector<32x128xbf16>
    %3 = arith.truncf %0 : vector<8x32xf32> to vector<8x32xbf16>
    %cst = arith.constant dense<0.000000e+00> : vector<8x128xf32>
    %4 = tpu.matmul %3, %2, %cst {dimension_numbers = #tpu.dot_dimension_numbers<[1], [0], [0], [1], [0, 0, 1, 1], [], []>} : vector<8x32xbf16>, vector<32x128xbf16>, vector<8x128xf32> -> vector<8x128xf32>
    %c0_4 = arith.constant 0 : index
    %c0_5 = arith.constant 0 : index
    %5 = vector.load %arg3[%c0_4, %c0_5] : memref<3x128xf32, #tpu.memory_space<vmem>>, vector<1x128xf32>
    %6 = vector.broadcast %5 : vector<1x128xf32> to vector<8x128xf32>
    %7 = arith.addf %4, %6 : vector<8x128xf32>
    %cst_6 = arith.constant 0.000000e+00 : f32
    %8 = vector.broadcast %cst_6 : f32 to vector<8x128xf32>
    %9 = arith.maximumf %7, %8 : vector<8x128xf32>
    %c1 = arith.constant 1 : index
    %c0_7 = arith.constant 0 : index
    %c0_8 = arith.constant 0 : index
    %10 = vector.load %arg2[%c1, %c0_7, %c0_8] : memref<3x128x128xbf16, #tpu.memory_space<vmem>>, vector<1x128x128xbf16>
    %11 = vector.shape_cast %10 : vector<1x128x128xbf16> to vector<128x128xbf16>
    %12 = arith.truncf %9 : vector<8x128xf32> to vector<8x128xbf16>
    %cst_9 = arith.constant dense<0.000000e+00> : vector<8x128xf32>
    %13 = tpu.matmul %12, %11, %cst_9 {dimension_numbers = #tpu.dot_dimension_numbers<[1], [0], [0], [1], [0, 0, 1, 1], [], []>} : vector<8x128xbf16>, vector<128x128xbf16>, vector<8x128xf32> -> vector<8x128xf32>
    %c1_10 = arith.constant 1 : index
    %c0_11 = arith.constant 0 : index
    %14 = vector.load %arg3[%c1_10, %c0_11] : memref<3x128xf32, #tpu.memory_space<vmem>>, vector<1x128xf32>
    %15 = vector.broadcast %14 : vector<1x128xf32> to vector<8x128xf32>
    %16 = arith.addf %13, %15 : vector<8x128xf32>
    %cst_12 = arith.constant 0.000000e+00 : f32
    %17 = vector.broadcast %cst_12 : f32 to vector<8x128xf32>
    %18 = arith.maximumf %16, %17 : vector<8x128xf32>
    %c2 = arith.constant 2 : index
    %c0_13 = arith.constant 0 : index
    %c0_14 = arith.constant 0 : index
    %19 = vector.load %arg2[%c2, %c0_13, %c0_14] : memref<3x128x128xbf16, #tpu.memory_space<vmem>>, vector<1x128x128xbf16>
    %20 = vector.shape_cast %19 : vector<1x128x128xbf16> to vector<128x128xbf16>
    %21 = arith.truncf %18 : vector<8x128xf32> to vector<8x128xbf16>
    %cst_15 = arith.constant dense<0.000000e+00> : vector<8x128xf32>
    %22 = tpu.matmul %21, %20, %cst_15 {dimension_numbers = #tpu.dot_dimension_numbers<[1], [0], [0], [1], [0, 0, 1, 1], [], []>} : vector<8x128xbf16>, vector<128x128xbf16>, vector<8x128xf32> -> vector<8x128xf32>
    %c2_16 = arith.constant 2 : index
    %c0_17 = arith.constant 0 : index
    %23 = vector.load %arg3[%c2_16, %c0_17] : memref<3x128xf32, #tpu.memory_space<vmem>>, vector<1x128xf32>
    %24 = vector.broadcast %23 : vector<1x128xf32> to vector<8x128xf32>
    %25 = arith.addf %22, %24 : vector<8x128xf32>
    %c0_18 = arith.constant 0 : index
    %c0_19 = arith.constant 0 : index
    %26 = vector.load %arg4[%c0_18, %c0_19] : memref<8x128xf32, #tpu.memory_space<vmem>>, vector<8x128xf32>
    tpu.vector_store %arg4[%c0_18, %c0_19], %25 {strides = array<i32>} : memref<8x128xf32, #tpu.memory_space<vmem>>, vector<8x128xf32>,
    return
  }
  func.func @transform_0(%arg0: i32) -> (i32, i32) {
    %c0_i32 = arith.constant 0 : i32
    %c0_i32_0 = arith.constant 0 : i32
    return %arg0, %c0_i32 : i32, i32
  }
  func.func @transform_1(%arg0: i32) -> (i32, i32, i32) {
    %c0_i32 = arith.constant 0 : i32
    %c0_i32_0 = arith.constant 0 : i32
    %c0_i32_1 = arith.constant 0 : i32
    %c0_i32_2 = arith.constant 0 : i32
    return %c0_i32, %c0_i32_0, %c0_i32_1 : i32, i32, i32
  }
  func.func @transform_2(%arg0: i32) -> (i32, i32) {
    %c0_i32 = arith.constant 0 : i32
    %c0_i32_0 = arith.constant 0 : i32
    %c0_i32_1 = arith.constant 0 : i32
    return %c0_i32, %c0_i32_0 : i32, i32
  }
  func.func @transform_3(%arg0: i32) -> (i32, i32) {
    %c0_i32 = arith.constant 0 : i32
    %c0_i32_0 = arith.constant 0 : i32
    return %arg0, %c0_i32 : i32, i32
  }
}

</mosaic_0001>

<llo_original>
// kernel: _lambda_.1
$region0: #{_lambda_.1}
  #allocation0 [shape = 'u32[]', space=smem, size = 0x4, offset = 0x4, fixed_abs, tag = 'smem constant byte address 0x4 - core index']
  #allocation1 [shape = 'u32[144,128]{1,0:T(1,128)}', space=vmem, size = 0x12000, scoped, tag = 'internal scratch']
  %s0 = inlined_call_operand.hbm [shape: f32[8,32], index: 0, kind: input, shape index: {}]
  %s1 = inlined_call_operand.hbm [shape: bf16[3,128,128], index: 1, kind: input, shape index: {}]
  %s2 = inlined_call_operand.vmem [shape: f32[3,128], index: 2, kind: input, shape index: {}]
  %s3 = inlined_call_operand.hbm [shape: f32[8,128], index: 3, kind: output, shape index: {}]
  %s4 = sld [smem:[#allocation0]]
  $region30: #{_lambda_.1} parent=0
    _
  %s6 = ssub.s32 1, %s4
  %s7 = scalar_select 0, %s6, %s4
  $region1: #{_lambda_.1} parent=0
    #allocation2 [shape = 'u8[4096]{0}', space=vmem, size = 0x1000, scoped, tag = 'input window, operand 0, single buffered']
    #allocation3 [shape = 's32[1]{0}', space=sflag, size = 0x4, scoped, tag = 'scoped memory for _lambda_.1']
    #allocation4 [shape = 's32[1]{0}', space=sflag, size = 0x4, scoped, tag = 'scoped memory for _lambda_.1']
    #allocation5 [shape = 'u8[98304]{0}', space=vmem, size = 0x18000, scoped, tag = 'input window, operand 1, single buffered']
    #allocation6 [shape = 's32[1]{0}', space=sflag, size = 0x4, scoped, tag = 'scoped memory for _lambda_.1']
    #allocation7 [shape = 'u8[4096]{0}', space=vmem, size = 0x1000, scoped, tag = 'output window, operand 0, single buffered']
    %8 = vsyncpa [#allocation3], 0
    %9 = vsyncpa [#allocation6], 0
    %10 = vsyncpa [#allocation4], 0
    // Predicated region
    $region2: #{_lambda_.1} parent=1 // pred_check
      _
    $region3: #{_lambda_.1} parent=1 // pred_check_branch
      %12 = sbr.rel (0) target = $region5
    $region4: #{_lambda_.1} parent=1 // pred_region
      %s14 = ssub.s32 128, 128
      %15 = vsyncadd [#allocation3], %s14
      %s17 = sshll.u32 [#allocation2], 4
      %s18 = int_to_ptr.vmem [resolvable:$true] %s17
      %20 = dma.hbm_to_vmem [thread:$0]  %s0, 128, %s18, [#allocation3]
    $region5: #{_lambda_.1} parent=1 // pred_fallthru
      _
    // Predicated region
    $region6: #{_lambda_.1} parent=1 // pred_check
      _
    $region7: #{_lambda_.1} parent=1 // pred_check_branch
      %22 = sbr.rel (0) target = $region9
    $region8: #{_lambda_.1} parent=1 // pred_region
      %s24 = ssub.s32 3072, 3072
      %25 = vsyncadd [#allocation6], %s24
      %s26 = sshll.u32 [#allocation5], 4
      %s27 = int_to_ptr.vmem [resolvable:$true] %s26
      %32 = dma.hbm_to_vmem [thread:$0]  %s1, 3072, %s27, [#allocation6], 64, 64, 4
    $region9: #{_lambda_.1} parent=1 // pred_fallthru
      _
    // Predicated region
    $region10: #{_lambda_.1} parent=1 // pred_check
      _
    $region11: #{_lambda_.1} parent=1 // pred_check_branch
      %34 = sbr.rel (0) target = $region13
    $region12: #{_lambda_.1} parent=1 // pred_region
      _
    $region13: #{_lambda_.1} parent=1 // pred_fallthru
      _
    // Predicated region
    $region14: #{_lambda_.1} parent=1 // pred_check
      _
    $region15: #{_lambda_.1} parent=1 // pred_check_branch
      %36 = sbr.rel (0) target = $region17
    $region16: #{_lambda_.1} parent=1 // pred_region
      %37 = dma.done [#allocation3], 128
    $region17: #{_lambda_.1} parent=1 // pred_fallthru
      _
    // Predicated region
    $region18: #{_lambda_.1} parent=1 // pred_check
      _
    $region19: #{_lambda_.1} parent=1 // pred_check_branch
      %39 = sbr.rel (0) target = $region21
    $region20: #{_lambda_.1} parent=1 // pred_region
      %40 = dma.done [#allocation6], 3072
    $region21: #{_lambda_.1} parent=1 // pred_fallthru
      _
    %v42 = vld [vmem:[#allocation2] sm:$0xff]
    %v43 = vld [vmem:[#allocation5] sm:$0xf]
    %v44 = vld [vmem:[#allocation5 + $0x4] sm:$0xf]
    %v45 = vld [vmem:[#allocation5 + $0x8] sm:$0xf]
    %v46 = vld [vmem:[#allocation5 + $0xc] sm:$0xf]
    %v47 = vpack.c.bf16 %v42, %v42
    %v48 = vld [vmem:[%s2] sm:$0x1]
    %v49 = vlaneseq
    %v50 = vshrl.u32 %v49, 7
    %v51 = vsub.s32 0, %v50
    %v52 = vrot.slane %v48, %v51
    %v57 = vunpack.c.l.b16 %v43
    %v58 = vunpack.c.l.b16 %v44
    %v59 = vunpack.c.l.b16 %v45
    %v60 = vunpack.c.l.b16 %v46
    %v61 = vpack.c.b16 %v58, %v57
    %v62 = vpack.c.b16 %v60, %v59
    %vm65 = vcmask 261120
    %v67 = vsel %vm65, %v47, 0
    %69 = vmatprep.subr.bf16.mxu0 0
    %70 = vmatpush1.bf16.msra.mxu0 %v61
    %71 = vmatprep.subr.bf16.mxu0 0
    %72 = vmatpush1.bf16.msra.mxu0 %v62
    %73 = vmatprep.subr.bf16.mxu0 0
    %74 = vmatpush1.bf16.msra.mxu0 0
    %75 = vmatprep.subr.bf16.mxu0 0
    %76 = vmatpush1.bf16.msra.mxu0 0
    %77 = vmatprep.subr.bf16.mxu0 0
    %78 = vmatpush1.bf16.msra.mxu0 0
    %79 = vmatprep.subr.bf16.mxu0 0
    %80 = vmatpush1.bf16.msra.mxu0 0
    %81 = vmatprep.subr.bf16.mxu0 0
    %82 = vmatpush1.bf16.msra.mxu0 0
    %83 = vmatprep.subr.bf16.mxu0 0
    %84 = vmatpush1.bf16.msra.mxu0 0
    %85 = vmatprep.subr.bf16.mxu0 0
    %86 = vmatpush1.bf16.msra.mxu0 0
    %87 = vmatprep.subr.bf16.mxu0 0
    %88 = vmatpush1.bf16.msra.mxu0 0
    %89 = vmatprep.subr.bf16.mxu0 0
    %90 = vmatpush1.bf16.msra.mxu0 0
    %91 = vmatprep.subr.bf16.mxu0 0
    %92 = vmatpush1.bf16.msra.mxu0 0
    %93 = vmatprep.subr.bf16.mxu0 0
    %94 = vmatpush1.bf16.msra.mxu0 0
    %95 = vmatprep.subr.bf16.mxu0 0
    %96 = vmatpush1.bf16.msra.mxu0 0
    %97 = vmatprep.subr.bf16.mxu0 0
    %98 = vmatpush1.bf16.msra.mxu0 0
    %99 = vmatprep.subr.bf16.mxu0 0
    %100 = vmatpush1.bf16.msra.mxu0 0
    %101 = vmatprep.mubr.bf16.mxu0 0
    %102 = vmatmul.mubr.bf16.gmra.mrb[0].mxu0 %v67
    %v103 = vpop.f32.mrb[0].mxu0
    %v104 = vadd.f32 %v52, %v103
    %v105 = vpop.f32.mrb[0].mxu0
    %v106 = vpop.f32.mrb[0].mxu0
    %v107 = vpop.f32.mrb[0].mxu0
    %108 = vdwg.mxu0
    %v109 = vmax.f32 %v104, 0.0
    %s110 = scalar_lea.vmem [#allocation5], 64
    %v111 = vld [vmem:[%s110] sm:$0xf]
    %v112 = vld [vmem:[%s110 + $0x4] sm:$0xf]
    %v113 = vld [vmem:[%s110 + $0x8] sm:$0xf]
    %v114 = vld [vmem:[%s110 + $0xc] sm:$0xf]
    %v115 = vld [vmem:[%s110 + $0x10] sm:$0xf]
    %v116 = vld [vmem:[%s110 + $0x14] sm:$0xf]
    %v117 = vld [vmem:[%s110 + $0x18] sm:$0xf]
    %v118 = vld [vmem:[%s110 + $0x1c] sm:$0xf]
    %v119 = vld [vmem:[%s110 + $0x20] sm:$0xf]
    %v120 = vld [vmem:[%s110 + $0x24] sm:$0xf]
    %v121 = vld [vmem:[%s110 + $0x28] sm:$0xf]
    %v122 = vld [vmem:[%s110 + $0x2c] sm:$0xf]
    %v123 = vld [vmem:[%s110 + $0x30] sm:$0xf]
    %v124 = vld [vmem:[%s110 + $0x34] sm:$0xf]
    %v125 = vld [vmem:[%s110 + $0x38] sm:$0xf]
    %v126 = vld [vmem:[%s110 + $0x3c] sm:$0xf]
    %v127 = vpack.c.bf16 %v109, %v109
    %v128 = vld [vmem:[%s2 + $0x1] sm:$0x1]
    %v129 = vlaneseq
    %v130 = vshrl.u32 %v129, 7
    %v131 = vsub.s32 0, %v130
    %v132 = vrot.slane %v128, %v131
    %v149 = vunpack.c.l.b16 %v111
    %v150 = vunpack.c.l.b16 %v112
    %v151 = vunpack.c.l.b16 %v113
    %v152 = vunpack.c.l.b16 %v114
    %v153 = vunpack.c.l.b16 %v115
    %v154 = vunpack.c.l.b16 %v116
    %v155 = vunpack.c.l.b16 %v117
    %v156 = vunpack.c.l.b16 %v118
    %v157 = vunpack.c.l.b16 %v119
    %v158 = vunpack.c.l.b16 %v120
    %v159 = vunpack.c.l.b16 %v121
    %v160 = vunpack.c.l.b16 %v122
    %v161 = vunpack.c.l.b16 %v123
    %v162 = vunpack.c.l.b16 %v124
    %v163 = vunpack.c.l.b16 %v125
    %v164 = vunpack.c.l.b16 %v126
    %v165 = vpack.c.b16 %v150, %v149
    %v166 = vpack.c.b16 %v152, %v151
    %v167 = vpack.c.b16 %v154, %v153
    %v168 = vpack.c.b16 %v156, %v155
    %v169 = vpack.c.b16 %v158, %v157
    %v170 = vpack.c.b16 %v160, %v159
    %v171 = vpack.c.b16 %v162, %v161
    %v172 = vpack.c.b16 %v164, %v163
    %181 = vmatprep.subr.bf16.mxu0 0
    %182 = vmatpush1.bf16.msra.mxu0 %v165
    %183 = vmatprep.subr.bf16.mxu0 0
    %184 = vmatpush1.bf16.msra.mxu0 %v166
    %185 = vmatprep.subr.bf16.mxu0 0
    %186 = vmatpush1.bf16.msra.mxu0 %v167
    %187 = vmatprep.subr.bf16.mxu0 0
    %188 = vmatpush1.bf16.msra.mxu0 %v168
    %189 = vmatprep.subr.bf16.mxu0 0
    %190 = vmatpush1.bf16.msra.mxu0 %v169
    %191 = vmatprep.subr.bf16.mxu0 0
    %192 = vmatpush1.bf16.msra.mxu0 %v170
    %193 = vmatprep.subr.bf16.mxu0 0
    %194 = vmatpush1.bf16.msra.mxu0 %v171
    %195 = vmatprep.subr.bf16.mxu0 0
    %196 = vmatpush1.bf16.msra.mxu0 %v172
    %197 = vmatprep.subr.bf16.mxu0 0
    %198 = vmatpush1.bf16.msra.mxu0 0
    %199 = vmatprep.subr.bf16.mxu0 0
    %200 = vmatpush1.bf16.msra.mxu0 0
    %201 = vmatprep.subr.bf16.mxu0 0
    %202 = vmatpush1.bf16.msra.mxu0 0
    %203 = vmatprep.subr.bf16.mxu0 0
    %204 = vmatpush1.bf16.msra.mxu0 0
    %205 = vmatprep.subr.bf16.mxu0 0
    %206 = vmatpush1.bf16.msra.mxu0 0
    %207 = vmatprep.subr.bf16.mxu0 0
    %208 = vmatpush1.bf16.msra.mxu0 0
    %209 = vmatprep.subr.bf16.mxu0 0
    %210 = vmatpush1.bf16.msra.mxu0 0
    %211 = vmatprep.subr.bf16.mxu0 0
    %212 = vmatpush1.bf16.msra.mxu0 0
    %213 = vmatprep.mubr.bf16.mxu0 0
    %214 = vmatmul.mubr.bf16.gmra.mrb[0].mxu0 %v127
    %v215 = vpop.f32.mrb[0].mxu0
    %v216 = vadd.f32 %v132, %v215
    %v217 = vpop.f32.mrb[0].mxu0
    %v218 = vpop.f32.mrb[0].mxu0
    %v219 = vpop.f32.mrb[0].mxu0
    %220 = vdwg.mxu0
    %v221 = vmax.f32 %v216, 0.0
    %s222 = scalar_lea.vmem [#allocation5], 128
    %v223 = vld [vmem:[%s222] sm:$0xf]
    %v224 = vld [vmem:[%s222 + $0x4] sm:$0xf]
    %v225 = vld [vmem:[%s222 + $0x8] sm:$0xf]
    %v226 = vld [vmem:[%s222 + $0xc] sm:$0xf]
    %v227 = vld [vmem:[%s222 + $0x10] sm:$0xf]
    %v228 = vld [vmem:[%s222 + $0x14] sm:$0xf]
    %v229 = vld [vmem:[%s222 + $0x18] sm:$0xf]
    %v230 = vld [vmem:[%s222 + $0x1c] sm:$0xf]
    %v231 = vld [vmem:[%s222 + $0x20] sm:$0xf]
    %v232 = vld [vmem:[%s222 + $0x24] sm:$0xf]
    %v233 = vld [vmem:[%s222 + $0x28] sm:$0xf]
    %v234 = vld [vmem:[%s222 + $0x2c] sm:$0xf]
    %v235 = vld [vmem:[%s222 + $0x30] sm:$0xf]
    %v236 = vld [vmem:[%s222 + $0x34] sm:$0xf]
    %v237 = vld [vmem:[%s222 + $0x38] sm:$0xf]
    %v238 = vld [vmem:[%s222 + $0x3c] sm:$0xf]
    %v239 = vpack.c.bf16 %v221, %v221
    %v240 = vld [vmem:[%s2 + $0x2] sm:$0x1]
    %v241 = vlaneseq
    %v242 = vshrl.u32 %v241, 7
    %v243 = vsub.s32 0, %v242
    %v244 = vrot.slane %v240, %v243
    %v261 = vunpack.c.l.b16 %v223
    %v262 = vunpack.c.l.b16 %v224
    %v263 = vunpack.c.l.b16 %v225
    %v264 = vunpack.c.l.b16 %v226
    %v265 = vunpack.c.l.b16 %v227
    %v266 = vunpack.c.l.b16 %v228
    %v267 = vunpack.c.l.b16 %v229
    %v268 = vunpack.c.l.b16 %v230
    %v269 = vunpack.c.l.b16 %v231
    %v270 = vunpack.c.l.b16 %v232
    %v271 = vunpack.c.l.b16 %v233
    %v272 = vunpack.c.l.b16 %v234
    %v273 = vunpack.c.l.b16 %v235
    %v274 = vunpack.c.l.b16 %v236
    %v275 = vunpack.c.l.b16 %v237
    %v276 = vunpack.c.l.b16 %v238
    %v277 = vpack.c.b16 %v262, %v261
    %v278 = vpack.c.b16 %v264, %v263
    %v279 = vpack.c.b16 %v266, %v265
    %v280 = vpack.c.b16 %v268, %v267
    %v281 = vpack.c.b16 %v270, %v269
    %v282 = vpack.c.b16 %v272, %v271
    %v283 = vpack.c.b16 %v274, %v273
    %v284 = vpack.c.b16 %v276, %v275
    %293 = vmatprep.subr.bf16.mxu0 0
    %294 = vmatpush1.bf16.msra.mxu0 %v277
    %295 = vmatprep.subr.bf16.mxu0 0
    %296 = vmatpush1.bf16.msra.mxu0 %v278
    %297 = vmatprep.subr.bf16.mxu0 0
    %298 = vmatpush1.bf16.msra.mxu0 %v279
    %299 = vmatprep.subr.bf16.mxu0 0
    %300 = vmatpush1.bf16.msra.mxu0 %v280
    %301 = vmatprep.subr.bf16.mxu0 0
    %302 = vmatpush1.bf16.msra.mxu0 %v281
    %303 = vmatprep.subr.bf16.mxu0 0
    %304 = vmatpush1.bf16.msra.mxu0 %v282
    %305 = vmatprep.subr.bf16.mxu0 0
    %306 = vmatpush1.bf16.msra.mxu0 %v283
    %307 = vmatprep.subr.bf16.mxu0 0
    %308 = vmatpush1.bf16.msra.mxu0 %v284
    %309 = vmatprep.subr.bf16.mxu0 0
    %310 = vmatpush1.bf16.msra.mxu0 0
    %311 = vmatprep.subr.bf16.mxu0 0
    %312 = vmatpush1.bf16.msra.mxu0 0
    %313 = vmatprep.subr.bf16.mxu0 0
    %314 = vmatpush1.bf16.msra.mxu0 0
    %315 = vmatprep.subr.bf16.mxu0 0
    %316 = vmatpush1.bf16.msra.mxu0 0
    %317 = vmatprep.subr.bf16.mxu0 0
    %318 = vmatpush1.bf16.msra.mxu0 0
    %319 = vmatprep.subr.bf16.mxu0 0
    %320 = vmatpush1.bf16.msra.mxu0 0
    %321 = vmatprep.subr.bf16.mxu0 0
    %322 = vmatpush1.bf16.msra.mxu0 0
    %323 = vmatprep.subr.bf16.mxu0 0
    %324 = vmatpush1.bf16.msra.mxu0 0
    %325 = vmatprep.mubr.bf16.mxu0 0
    %326 = vmatmul.mubr.bf16.gmra.mrb[0].mxu0 %v239
    %v327 = vpop.f32.mrb[0].mxu0
    %v328 = vadd.f32 %v244, %v327
    %v329 = vpop.f32.mrb[0].mxu0
    %v330 = vpop.f32.mrb[0].mxu0
    %v331 = vpop.f32.mrb[0].mxu0
    %332 = vdwg.mxu0
    %333 = vst [vmem:[#allocation7] sm:$0xff] %v328
    // Predicated region
    $region22: #{_lambda_.1} parent=1 // pred_check
      _
    $region23: #{_lambda_.1} parent=1 // pred_check_branch
      %335 = sbr.rel (0) target = $region25
    $region24: #{_lambda_.1} parent=1 // pred_region
      %s337 = ssub.s32 128, 128
      %338 = vsyncadd [#allocation4], %s337
      %s340 = sshll.u32 [#allocation7], 4
      %s341 = int_to_ptr.vmem [resolvable:$true] %s340
      %343 = dma.vmem_to_hbm [thread:$0]  %s341, 128, %s3, [#allocation4]
    $region25: #{_lambda_.1} parent=1 // pred_fallthru
      _
    // Predicated region
    $region26: #{_lambda_.1} parent=1 // pred_check
      _
    $region27: #{_lambda_.1} parent=1 // pred_check_branch
      %345 = sbr.rel (0) target = $region29
    $region28: #{_lambda_.1} parent=1 // pred_region
      %346 = dma.done [#allocation4], 128
    $region29: #{_lambda_.1} parent=1 // pred_fallthru
      _
    %347 = vsyncpa [#allocation3], 1
    %348 = vsyncpa [#allocation6], 1
    %349 = vsyncpa [#allocation4], 1

</llo_original>
